<compile_context>
chip_gen: v6e
topology: v6e:2x2x1
jax: 0.10.0
libtpu: 0.0.40
codegen_flags: <defaults>
</compile_context>

<pallas_src>
import jax
import jax.numpy as jnp
from jax.experimental import pallas as pl
from jax.experimental.pallas import tpu as pltpu


def _wx_bias_relu_kernel(x_ref, w_ref, b_ref, o_ref):
    # x_ref: (K, TL)  w_ref: (N, K)  b_ref: (N, 1)  o_ref: (N, TL)
    y = jnp.dot(w_ref[...], x_ref[...], preferred_element_type=jnp.float32)
    # fused bias + ReLU epilogue (single store, no intermediates)
    o_ref[...] = jnp.maximum(y + b_ref[...], 0.0).astype(o_ref.dtype)


def _pick_tile_l(L):
    # Prefer big lane-dense tiles (512-1024 rows of f32 ~ near-roofline);
    # fall back to the full (possibly small) L, which is always a legal block.
    for t in (1024, 512, 256, 128):
        if L % t == 0:
            return t
    return L


def body_linear_forward(body_mat, weight, bias):
    """body_mat: (B, input_dim, L), weight: (output_dim, input_dim), bias: (output_dim,)."""
    B, input_dim, L = body_mat.shape
    output_dim = weight.shape[0]

    tile_l = _pick_tile_l(L)
    n_l = L // tile_l

    bias2d = bias.reshape(output_dim, 1)

    out = pl.pallas_call(
        _wx_bias_relu_kernel,
        out_shape=jax.ShapeDtypeStruct((B, output_dim, L), body_mat.dtype),
        grid_spec=pltpu.PrefetchScalarGridSpec(
            num_scalar_prefetch=0,
            grid=(B, n_l),
            in_specs=[
                # activation tile: batch squeezed, L on lanes
                pl.BlockSpec((None, input_dim, tile_l), lambda b, l: (b, 0, l)),
                # weight: resident across the whole grid
                pl.BlockSpec((output_dim, input_dim), lambda b, l: (0, 0)),
                # bias: resident, broadcast over lanes in-kernel
                pl.BlockSpec((output_dim, 1), lambda b, l: (0, 0)),
            ],
            out_specs=pl.BlockSpec(
                (None, output_dim, tile_l), lambda b, l: (b, 0, l)),
        ),
        compiler_params=pltpu.CompilerParams(
            dimension_semantics=("parallel", "parallel"),
            vmem_limit_bytes=32 * 1024 * 1024,
        ),
    )(body_mat, weight, bias2d)

    return out


if __name__ == "__main__":
    # Small shapes consistent with the module: batch=2, input_dim=32, seq=16.
    B, input_dim, L = 2, 32, 16
    output_dim = 1

    key = jax.random.PRNGKey(0)
    k_x, k_w, k_b = jax.random.split(key, 3)

    body_mat = jax.random.normal(k_x, (B, input_dim, L), dtype=jnp.float32)

    # Deterministic nn.Linear-style init: U(-1/sqrt(fan_in), 1/sqrt(fan_in))
    bound = 1.0 / (input_dim ** 0.5)
    weight = jax.random.uniform(k_w, (output_dim, input_dim),
                                minval=-bound, maxval=bound, dtype=jnp.float32)
    bias = jax.random.uniform(k_b, (output_dim,),
                              minval=-bound, maxval=bound, dtype=jnp.float32)

    out = body_linear_forward(body_mat, weight, bias)
    out = jax.block_until_ready(out)

    # Sanity check against a pure-JAX reference.
    ref = jnp.maximum(
        jnp.einsum("bkl,ok->bol", body_mat, weight)
        + bias[None, :, None], 0.0)
    assert out.shape == (B, output_dim, L)
    assert jnp.allclose(out, ref, atol=1e-5, rtol=1e-5)

    print("KERNEL_OK")
</pallas_src>

<mosaic_0001>
module attributes {stable_mosaic.version = 11 : i64} {
  func.func @_wx_bias_relu_kernel(%arg0: i32, %arg1: i32, %arg2: memref<1x32x16xf32, #tpu.memory_space<vmem>>, %arg3: memref<1x32xf32, #tpu.memory_space<vmem>>, %arg4: memref<1x1xf32, #tpu.memory_space<vmem>>, %arg5: memref<1x1x16xf32, #tpu.memory_space<vmem>>) attributes {dimension_semantics = [#tpu.dimension_semantics<parallel>, #tpu.dimension_semantics<parallel>], iteration_bounds = array<i64: 2, 1>, scalar_prefetch = 0 : i64, scratch_operands = 0 : i64, tpu.core_type = #tpu.core_type<tc>, window_params = [{transform_indices = @transform_0, window_bounds = array<i64: 1, 32, 16>}, {pipeline_mode = #tpu.pipeline_mode<synchronous>, transform_indices = @transform_1, window_bounds = array<i64: 1, 32>}, {pipeline_mode = #tpu.pipeline_mode<synchronous>, transform_indices = @transform_2, window_bounds = array<i64: 1, 1>}, {transform_indices = @transform_3, window_bounds = array<i64: 1, 1, 16>}]} {
    %c0 = arith.constant 0 : index
    %c0_0 = arith.constant 0 : index
    %0 = vector.load %arg3[%c0, %c0_0] : memref<1x32xf32, #tpu.memory_space<vmem>>, vector<1x32xf32>
    %c0_1 = arith.constant 0 : index
    %c0_2 = arith.constant 0 : index
    %c0_3 = arith.constant 0 : index
    %1 = vector.load %arg2[%c0_1, %c0_2, %c0_3] : memref<1x32x16xf32, #tpu.memory_space<vmem>>, vector<1x32x16xf32>
    %2 = vector.shape_cast %1 : vector<1x32x16xf32> to vector<32x16xf32>
    %cst = arith.constant dense<0.000000e+00> : vector<1x16xf32>
    %3 = tpu.matmul %0, %2, %cst {dimension_numbers = #tpu.dot_dimension_numbers<[1], [0], [0], [1], [0, 0, 1, 1], [], []>} : vector<1x32xf32>, vector<32x16xf32>, vector<1x16xf32> -> vector<1x16xf32>
    %c0_4 = arith.constant 0 : index
    %c0_5 = arith.constant 0 : index
    %4 = vector.load %arg4[%c0_4, %c0_5] : memref<1x1xf32, #tpu.memory_space<vmem>>, vector<1x1xf32>
    %5 = vector.broadcast %4 : vector<1x1xf32> to vector<1x16xf32>
    %6 = arith.addf %3, %5 : vector<1x16xf32>
    %cst_6 = arith.constant 0.000000e+00 : f32
    %7 = vector.broadcast %cst_6 : f32 to vector<1x16xf32>
    %8 = arith.maximumf %6, %7 : vector<1x16xf32>
    %c0_7 = arith.constant 0 : index
    %c0_8 = arith.constant 0 : index
    %c0_9 = arith.constant 0 : index
    %9 = vector.load %arg5[%c0_7, %c0_8, %c0_9] : memref<1x1x16xf32, #tpu.memory_space<vmem>>, vector<1x1x16xf32>
    %10 = vector.shape_cast %9 : vector<1x1x16xf32> to vector<1x16xf32>
    %11 = vector.shape_cast %8 : vector<1x16xf32> to vector<1x1x16xf32>
    tpu.vector_store %arg5[%c0_7, %c0_8, %c0_9], %11 {strides = array<i32>} : memref<1x1x16xf32, #tpu.memory_space<vmem>>, vector<1x1x16xf32>,
    return
  }
  func.func @transform_0(%arg0: i32, %arg1: i32) -> (i32, i32, i32) {
    %c0_i32 = arith.constant 0 : i32
    %c0_i32_0 = arith.constant 0 : i32
    return %arg0, %c0_i32, %arg1 : i32, i32, i32
  }
  func.func @transform_1(%arg0: i32, %arg1: i32) -> (i32, i32) {
    %c0_i32 = arith.constant 0 : i32
    %c0_i32_0 = arith.constant 0 : i32
    %c0_i32_1 = arith.constant 0 : i32
    return %c0_i32, %c0_i32_0 : i32, i32
  }
  func.func @transform_2(%arg0: i32, %arg1: i32) -> (i32, i32) {
    %c0_i32 = arith.constant 0 : i32
    %c0_i32_0 = arith.constant 0 : i32
    %c0_i32_1 = arith.constant 0 : i32
    return %c0_i32, %c0_i32_0 : i32, i32
  }
  func.func @transform_3(%arg0: i32, %arg1: i32) -> (i32, i32, i32) {
    %c0_i32 = arith.constant 0 : i32
    %c0_i32_0 = arith.constant 0 : i32
    return %arg0, %c0_i32, %arg1 : i32, i32, i32
  }
}

</mosaic_0001>

<llo_original>
// kernel: tpu_custom_call.1
$region0: #{tpu_custom_call.1}
  #allocation0 [shape = 'u32[]', space=smem, size = 0x4, offset = 0x4, fixed_abs, tag = 'smem constant byte address 0x4 - core index']
  #allocation1 [shape = 'u32[144,128]{1,0:T(1,128)}', space=vmem, size = 0x12000, scoped, tag = 'internal scratch']
  #allocation2 [shape = 'f32[1,1]{1,0:T(1,128)S(1)}', space=vmem, size = 0x200, scoped, tag = 'scoped memory for tpu_custom_call.1']
  %s0 = inlined_call_operand.vmem [shape: f32[2,32,16], index: 0, kind: input, shape index: {}]
  %s1 = inlined_call_operand.vmem [shape: f32[1,32], index: 1, kind: input, shape index: {}]
  %s2 = inlined_call_operand.<no memory space> [shape: f32[1,1], index: 2, kind: input, shape index: {}]
  %s3 = inlined_call_operand.hbm [shape: f32[2,1,16], index: 3, kind: output, shape index: {}]
  %s4 = sld [smem:[#allocation0]]
  $region45: #{tpu_custom_call.1} parent=0
    _
  %s6 = ssub.s32 1, %s4
  %s7 = scalar_select 0, %s6, %s4
  %v8 = vstv %s2
  %9 = vst [vmem:[#allocation2] sm:$0x1] %v8
  $region1: #{tpu_custom_call.1} parent=0
    #allocation3 [shape = 'u8[1024]{0}', space=vmem, size = 0x400, scoped, tag = 'output window, operand 0']
    #allocation4 [shape = 's32[2]{0}', space=sflag, size = 0x8, scoped, tag = 'scoped memory for tpu_custom_call.1']
    %10 = vsyncpa [#allocation4], 0
    %s11 = scalar_lea.sflag [#allocation4], 1
    %12 = vsyncpa %s11, 0
    loop: start=0, step=1, limit=4
    $region2: #{tpu_custom_call.1} parent=1 // loop_pre_header
      _
    $region3: #{tpu_custom_call.1} parent=1 // loop_header
      %s14 = sphi 0, %s18
      %p15 = scmp.ge.s32.totalorder %s14, 4
      %s21 = sphi 0, %s33
      %s22 = sphi 0, %s29
      %s23 = sphi 0, %s21
      %s24 = sphi 0, %s22
      %s25 = sphi 0, %s23
      %s26 = sphi 0, %s24
      %s38 = sphi 0, %s40
      %s41 = sphi 0, %s38
      %s42 = sphi 0, %s41
      %s58 = sphi 0, %s42
      %s62 = sphi 0, %s62
      %s64 = sphi 0, %s62
      %s65 = sphi 0, %s64
      %s79 = sphi 0, %s65
      %s83 = sphi 0, %s83
      %s85 = sphi 0, %s83
      %s86 = sphi 0, %s85
      %s100 = sphi 0, %s86
      %s108 = sphi 0, %s110
      %s111 = sphi 0, %s108
      %s112 = sphi 0, %s111
      %s128 = sphi 0, %s112
    $region4: #{tpu_custom_call.1} parent=1 // loop_header_branch
      %17 = sbr.rel (%p15) target = $region8
    $region5: #{tpu_custom_call.1} parent=1 // loop_body
      %s19 = ssub.s32 %s14, 1
      %s20 = ssub.s32 %s14, 2
      %s27 = sadd.s32 1, %s22
      %p28 = scmp.ge.s32.totalorder %s27, 1
      %s29 = scalar_select %p28, 0, %s27
      %s30 = sadd.s32 1, %s21
      %s31 = scalar_select %p28, %s30, %s21
      %p32 = scmp.ge.s32.totalorder %s31, 2
      %s33 = scalar_select %p32, 0, %s31
      %s34 = ssub.s32 %s21, %s33
      %s35 = ssub.s32 %s22, %s29
      %s36 = sor.u32 %s34, %s35
      %p37 = scmp.eq.s32.totalorder %s36, 0
      %s39 = sadd.s32 %s38, 1
      %s40 = scalar_select %p37, %s38, %s39
      %p43 = pneg %p37
      %p44 = scmp.eq.s32.totalorder %s14, 1
      %p45 = por %p43, %p44
      %p46 = scmp.ne.s32.totalorder %s38, %s41
      %p47 = scmp.eq.s32.totalorder %s14, 0
      %p48 = por %p46, %p47
      %p49 = scmp.ne.s32.totalorder %s38, %s41
      %p50 = scmp.eq.s32.totalorder %s19, 1
      %p51 = por %p49, %p50
      %p52 = scmp.ne.s32.totalorder %s41, %s42
      %p53 = scmp.eq.s32.totalorder %s19, 0
      %p54 = por %p52, %p53
      %p55 = scmp.ne.s32.totalorder %s41, %s42
      %p56 = scmp.eq.s32.totalorder %s20, 1
      %p57 = por %p55, %p56
      %p59 = scmp.ne.s32.totalorder %s42, %s58
      %p60 = scmp.eq.s32.totalorder %s20, 0
      %p61 = por %p59, %p60
      %s63 = sadd.s32 %s62, 1
      %p66 = scmp.eq.s32.totalorder %s14, 1
      %p67 = scmp.ne.s32.totalorder %s62, %s64
      %p68 = scmp.eq.s32.totalorder %s14, 0
      %p69 = por %p67, %p68
      %p70 = scmp.ne.s32.totalorder %s62, %s64
      %p71 = scmp.eq.s32.totalorder %s19, 1
      %p72 = por %p70, %p71
      %p73 = scmp.ne.s32.totalorder %s64, %s65
      %p74 = scmp.eq.s32.totalorder %s19, 0
      %p75 = por %p73, %p74
      %p76 = scmp.ne.s32.totalorder %s64, %s65
      %p77 = scmp.eq.s32.totalorder %s20, 1
      %p78 = por %p76, %p77
      %p80 = scmp.ne.s32.totalorder %s65, %s79
      %p81 = scmp.eq.s32.totalorder %s20, 0
      %p82 = por %p80, %p81
      %s84 = sadd.s32 %s83, 1
      %p87 = scmp.eq.s32.totalorder %s14, 1
      %p88 = scmp.ne.s32.totalorder %s83, %s85
      %p89 = scmp.eq.s32.totalorder %s14, 0
      %p90 = por %p88, %p89
      %p91 = scmp.ne.s32.totalorder %s83, %s85
      %p92 = scmp.eq.s32.totalorder %s19, 1
      %p93 = por %p91, %p92
      %p94 = scmp.ne.s32.totalorder %s85, %s86
      %p95 = scmp.eq.s32.totalorder %s19, 0
      %p96 = por %p94, %p95
      %p97 = scmp.ne.s32.totalorder %s85, %s86
      %p98 = scmp.eq.s32.totalorder %s20, 1
      %p99 = por %p97, %p98
      %p101 = scmp.ne.s32.totalorder %s86, %s100
      %p102 = scmp.eq.s32.totalorder %s20, 0
      %p103 = por %p101, %p102
      %s104 = ssub.s32 %s21, %s33
      %s105 = ssub.s32 %s22, %s29
      %s106 = sor.u32 %s104, %s105
      %p107 = scmp.eq.s32.totalorder %s106, 0
      %s109 = sadd.s32 %s108, 1
      %s110 = scalar_select %p107, %s108, %s109
      %p113 = pneg %p107
      %p114 = scmp.eq.s32.totalorder %s14, 1
      %p115 = por %p113, %p114
      %p116 = scmp.ne.s32.totalorder %s108, %s111
      %p117 = scmp.eq.s32.totalorder %s14, 0
      %p118 = por %p116, %p117
      %p119 = scmp.ne.s32.totalorder %s108, %s111
      %p120 = scmp.eq.s32.totalorder %s19, 1
      %p121 = por %p119, %p120
      %p122 = scmp.ne.s32.totalorder %s111, %s112
      %p123 = scmp.eq.s32.totalorder %s19, 0
      %p124 = por %p122, %p123
      %p125 = scmp.ne.s32.totalorder %s111, %s112
      %p126 = scmp.eq.s32.totalorder %s20, 1
      %p127 = por %p125, %p126
      %p129 = scmp.ne.s32.totalorder %s112, %s128
      %p130 = scmp.eq.s32.totalorder %s20, 0
      %p131 = por %p129, %p130
      %p132 = scmp.le.s32.totalorder 1, %s14
      %p133 = scmp.lt.s32.totalorder %s14, 3
      %p134 = pnand %p132, %p133
      %p135 = pneg %p134
      // Predicated region
      $region9: #{tpu_custom_call.1} parent=5 // pred_check
        _
      $region10: #{tpu_custom_call.1} parent=5 // pred_check_branch
        %137 = sbr.rel (%p134) target = $region12
      $region11: #{tpu_custom_call.1} parent=5 // pred_region
        %s138 = ssub.s32 %s14, 1
        // Predicated region
        $region13: #{tpu_custom_call.1} parent=11 // pred_check
          %p139 = pneg %p75
        $region14: #{tpu_custom_call.1} parent=11 // pred_check_branch
          %141 = sbr.rel (%p139) target = $region16
        $region15: #{tpu_custom_call.1} parent=11 // pred_region
          _
        $region16: #{tpu_custom_call.1} parent=11 // pred_fallthru
          _
        // Predicated region
        $region17: #{tpu_custom_call.1} parent=11 // pred_check
          %p142 = pneg %p96
        $region18: #{tpu_custom_call.1} parent=11 // pred_check_branch
          %144 = sbr.rel (%p142) target = $region20
        $region19: #{tpu_custom_call.1} parent=11 // pred_region
          _
        $region20: #{tpu_custom_call.1} parent=11 // pred_fallthru
          _
      $region12: #{tpu_custom_call.1} parent=5 // pred_fallthru
        _
      %p145 = scmp.lt.s32.totalorder %s14, 2
      // Predicated region
      $region21: #{tpu_custom_call.1} parent=5 // pred_check
        %p146 = pneg %p145
      $region22: #{tpu_custom_call.1} parent=5 // pred_check_branch
        %148 = sbr.rel (%p146) target = $region24
      $region23: #{tpu_custom_call.1} parent=5 // pred_region
        // Predicated region
        $region25: #{tpu_custom_call.1} parent=23 // pred_check
          %p149 = pneg %p48
        $region26: #{tpu_custom_call.1} parent=23 // pred_check_branch
          %151 = sbr.rel (%p149) target = $region28
        $region27: #{tpu_custom_call.1} parent=23 // pred_region
          %p152 = scmp.lt.s32.totalorder %s21, 1
          %s153 = scalar_select %p152, %s21, 1
          %p154 = scmp.lt.s32.totalorder %s22, 0
          %s155 = scalar_select %p154, %s22, 0
          %s156 = smul.addr %s153, 4
          %s157 = sadd.s32 %s155, %s156
          %s158 = smul.addr %s157, 8
          %s159 = scalar_lea.vmem %s0, %s158
        $region28: #{tpu_custom_call.1} parent=23 // pred_fallthru
          _
      $region24: #{tpu_custom_call.1} parent=5 // pred_fallthru
        _
      %p160 = scmp.le.s32.totalorder 1, %s14
      %p161 = scmp.lt.s32.totalorder %s14, 3
      %p162 = pnand %p160, %p161
      %p163 = pneg %p162
      // Predicated region
      $region29: #{tpu_custom_call.1} parent=5 // pred_check
        _
      $region30: #{tpu_custom_call.1} parent=5 // pred_check_branch
        %165 = sbr.rel (%p162) target = $region32
      $region31: #{tpu_custom_call.1} parent=5 // pred_region
        %s166 = ssub.s32 %s14, 1
        %p167 = scmp.lt.s32.totalorder %s23, 1
        %s168 = scalar_select %p167, %s23, 1
        %p169 = scmp.lt.s32.totalorder %s24, 0
        %s170 = scalar_select %p169, %s24, 0
        %s171 = smul.addr %s168, 4
        %s172 = sadd.s32 %s170, %s171
        %s173 = smul.addr %s172, 8
        %s174 = scalar_lea.vmem %s0, %s173
        %p175 = pneg %p54
        %p176 = pneg %p51
        %p177 = pneg %p75
        %p178 = pneg %p72
        %p179 = pneg %p96
        %p180 = pneg %p93
        %p181 = pneg %p124
        %p182 = pneg %p121
        %s183 = sand.u32 %s111, 1
        %s184 = scalar_lea.sflag [#allocation4], %s183
        %s185 = sand.u32 %s111, 1
        %s186 = scalar_lea.vmem [#allocation3], %s185
        %p187 = scmp.lt.s32.totalorder %s23, 1
        %s188 = scalar_select %p187, %s23, 1
        %p189 = scmp.lt.s32.totalorder %s24, 0
        %s190 = scalar_select %p189, %s24, 0
        %s191 = smul.addr %s188, 4
        %s192 = sadd.s32 %s190, %s191
        %s193 = smul.addr %s192, 8
        %s194 = scalar_lea.vmem %s0, %s193
        %v195 = vld [vmem:[%s1] sm:$0x1]
        %v196 = vld [vmem:[%s194] sm:$0xff]
        %v197 = vld [vmem:[%s194 + $0x8] sm:$0xff]
        %v198 = vld [vmem:[%s194 + $0x10] sm:$0xff]
        %v199 = vld [vmem:[%s194 + $0x18] sm:$0xff]
        %v200 = vld [vmem:[#allocation2] sm:$0x1]
        %202 = vset.pattern.permute.xlu0 0
        %203 = vperm.xlu0 %202, %v200
        %v204 = vpop.permute.xlu0 %203
        %v206 = vlaneseq
        %v207 = vshrl.u32 %v206, 7
        %v208 = vsub.s32 0, %v207
        %v209 = vrot.slane %v204, %v208
        %vm210 = vcmask 261120
        %v212 = vsel %vm210, %v195, 0
        %214 = vmatprep.subr.mxu0 0.0
        %215 = vmatpush1.msra.mxu0 0.0
        %216 = vmatprep.subr.mxu0 0.0
        %217 = vmatpush1.msra.mxu0 0.0
        %218 = vmatprep.subr.mxu0 0.0
        %219 = vmatpush1.msra.mxu0 0.0
        %220 = vmatprep.subr.mxu0 0.0
        %221 = vmatpush1.msra.mxu0 0.0
        %222 = vmatprep.subr.mxu0 0.0
        %223 = vmatpush1.msra.mxu0 0.0
        %224 = vmatprep.subr.mxu0 0.0
        %225 = vmatpush1.msra.mxu0 0.0
        %226 = vmatprep.subr.mxu0 0.0
        %227 = vmatpush1.msra.mxu0 0.0
        %228 = vmatprep.subr.mxu0 0.0
        %229 = vmatpush1.msra.mxu0 0.0
        %230 = vmatprep.subr.mxu0 0.0
        %231 = vmatpush1.msra.mxu0 0.0
        %232 = vmatprep.subr.mxu0 0.0
        %233 = vmatpush1.msra.mxu0 0.0
        %234 = vmatprep.subr.mxu0 0.0
        %235 = vmatpush1.msra.mxu0 0.0
        %236 = vmatprep.subr.mxu0 0.0
        %237 = vmatpush1.msra.mxu0 0.0
        %238 = vmatprep.subr.mxu0 0.0
        %239 = vmatpush1.msra.mxu0 %v199
        %240 = vmatprep.subr.mxu0 0.0
        %241 = vmatpush1.msra.mxu0 %v198
        %242 = vmatprep.subr.mxu0 0.0
        %243 = vmatpush1.msra.mxu0 %v197
        %244 = vmatprep.subr.mxu0 0.0
        %245 = vmatpush1.msra.mxu0 %v196
        %246 = vmatprep.subr.mxu0 0.0
        %247 = vmatpush2.msra.mxu0 0.0
        %248 = vmatprep.subr.mxu0 0.0
        %249 = vmatpush2.msra.mxu0 0.0
        %250 = vmatprep.subr.mxu0 0.0
        %251 = vmatpush2.msra.mxu0 0.0
        %252 = vmatprep.subr.mxu0 0.0
        %253 = vmatpush2.msra.mxu0 0.0
        %254 = vmatprep.subr.mxu0 0.0
        %255 = vmatpush2.msra.mxu0 0.0
        %256 = vmatprep.subr.mxu0 0.0
        %257 = vmatpush2.msra.mxu0 0.0
        %258 = vmatprep.subr.mxu0 0.0
        %259 = vmatpush2.msra.mxu0 0.0
        %260 = vmatprep.subr.mxu0 0.0
        %261 = vmatpush2.msra.mxu0 0.0
        %262 = vmatprep.subr.mxu0 0.0
        %263 = vmatpush2.msra.mxu0 0.0
        %264 = vmatprep.subr.mxu0 0.0
        %265 = vmatpush2.msra.mxu0 0.0
        %266 = vmatprep.subr.mxu0 0.0
        %267 = vmatpush2.msra.mxu0 0.0
        %268 = vmatprep.subr.mxu0 0.0
        %269 = vmatpush2.msra.mxu0 0.0
        %270 = vmatprep.subr.mxu0 0.0
        %271 = vmatpush2.msra.mxu0 0.0
        %272 = vmatprep.subr.mxu0 0.0
        %273 = vmatpush2.msra.mxu0 0.0
        %274 = vmatprep.subr.mxu0 0.0
        %275 = vmatpush2.msra.mxu0 0.0
        %276 = vmatprep.subr.mxu0 0.0
        %277 = vmatpush2.msra.mxu0 0.0
        %278 = vmatprep.mubr.f32.mxu0 0.0
        %279 = vmatmul.mubr.f32.gmra.mxu0 %v212
        %v280 = vpop.f32.mrf.mxu0
        %v281 = vadd.f32 %v209, %v280
        %v282 = vpop.f32.mrf.mxu0
        %283 = vdwg.mxu0
        %v284 = vmax.f32 %v281, 0.0
        %vm285 = vcmask 122880
        %286 = vst.msk [vmem:[%s186] sm:$0x1] %vm285, %v284
        %s287 = sand.u32 %s111, 1
        %s288 = scalar_lea.sflag [#allocation4], %s287
        %s289 = sand.u32 %s111, 1
        %s290 = scalar_lea.vmem [#allocation3], %s289
        // Predicated region
        $region33: #{tpu_custom_call.1} parent=31 // pred_check
          %p291 = pneg %p121
        $region34: #{tpu_custom_call.1} parent=31 // pred_check_branch
          %293 = sbr.rel (%p291) target = $region36
        $region35: #{tpu_custom_call.1} parent=31 // pred_region
          %s295 = ssub.s32 16, 16
          %296 = vsyncadd %s288, %s295
          %s297 = sadd.s32 %s24, %s23
          %s298 = smul.addr %s297, 16
          %s299 = scalar_lea.hbm %s3, %s298
          %s301 = sshll.u32 %s290, 4
          %s302 = int_to_ptr.vmem [resolvable:$true] %s301
          %304 = dma.vmem_to_hbm [thread:$0]  %s302, 16, %s299, %s288
        $region36: #{tpu_custom_call.1} parent=31 // pred_fallthru
          _
      $region32: #{tpu_custom_call.1} parent=5 // pred_fallthru
        _
      %p305 = scmp.le.s32.totalorder 2, %s14
      // Predicated region
      $region37: #{tpu_custom_call.1} parent=5 // pred_check
        %p306 = pneg %p305
      $region38: #{tpu_custom_call.1} parent=5 // pred_check_branch
        %308 = sbr.rel (%p306) target = $region40
      $region39: #{tpu_custom_call.1} parent=5 // pred_region
        %s309 = ssub.s32 %s14, 2
        // Predicated region
        $region41: #{tpu_custom_call.1} parent=39 // pred_check
          %p310 = pneg %p127
        $region42: #{tpu_custom_call.1} parent=39 // pred_check_branch
          %312 = sbr.rel (%p310) target = $region44
        $region43: #{tpu_custom_call.1} parent=39 // pred_region
          %s313 = sand.u32 %s112, 1
          %s314 = scalar_lea.sflag [#allocation4], %s313
          %s315 = sand.u32 %s112, 1
          %s316 = scalar_lea.vmem [#allocation3], %s315
          %317 = dma.done %s314, 16
        $region44: #{tpu_custom_call.1} parent=39 // pred_fallthru
          _
      $region40: #{tpu_custom_call.1} parent=5 // pred_fallthru
        _
    $region6: #{tpu_custom_call.1} parent=1 // loop_footer
      %s18 = sadd.s32 1, %s14
    $region7: #{tpu_custom_call.1} parent=1 // loop_footer_branch
      %13 = sbr.rel target = $region3
    $region8: #{tpu_custom_call.1} parent=1 // loop_exit
      _
    %318 = vsyncpa [#allocation4], 1
    %s319 = scalar_lea.sflag [#allocation4], 1
    %320 = vsyncpa %s319, 1

</llo_original>
